<compile_context>
chip_gen: v7x
topology: tpu7x:2x2x1
jax: 0.10.0
libtpu: 0.0.40
codegen_flags: <defaults>
</compile_context>

<pallas_src>
import jax
import jax.numpy as jnp
from jax.experimental import pallas as pl
from jax.experimental.pallas import tpu as pltpu

BETA = 1e-06


def _cdiv(a, b):
    return (a + b - 1) // b


def _round_up(a, b):
    return _cdiv(a, b) * b


def m_log_kernel(x_ref, eps_ref, eye_ref, o_ref):
    # All refs are (TB, D*D) blocks; eps/eye are constants replicated to the
    # full tile height, so every op below is a direct vreg-to-vreg VPU/EUP op
    # (no broadcasts).  The kernel is HBM-bandwidth bound; the extra select
    # ops are free filler.
    x = x_ref[...]
    eps = eps_ref[...]
    # Exactly torch.where(input1 - espison < 0, espison, input1)
    x2 = jnp.where(x - eps < 0, eps, x)
    # Keep the reference association (input2 + ones) - eye; do NOT fold into
    # input2 + (1 - eye) -- it changes results for tiny diagonal entries.
    o_ref[...] = jnp.log((x2 + 1.0) - eye_ref[...])


def m_log(x, *, target_tile_bytes=2 * 1024 * 1024, min_grid_steps=8):
    n, d, d2 = x.shape
    assert d == d2, "M_Log expects batched square matrices (N, D, D)"
    dd = d * d
    dtype = x.dtype
    itemsize = jnp.dtype(dtype).itemsize

    # Lane-dense flatten: free for a contiguous (N, D, D) array.
    # Note: for D where D*D is not a multiple of 128 the last dim is still the
    # full array extent (legal), just with partially masked stores.
    xf = x.reshape(n, dd)

    # --- Tile-height selection -------------------------------------------
    # ~2 MiB tiles (double-buffered in+out stays well inside the default
    # scoped VMEM on every generation, incl. v7x's 64 MiB physical VMEM), but
    # capped so the grid has at least `min_grid_steps` steps: v7x's two
    # TensorCores each need several steps for megacore sharding + per-core
    # double-buffering.
    row_bytes = dd * itemsize
    tb = max(1, target_tile_bytes // row_bytes)
    tb = max(8, (tb // 8) * 8)                       # sublane-aligned
    cap = _round_up(_cdiv(n, min_grid_steps), 8)     # >= min_grid_steps steps
    tb = max(8, min(tb, cap))
    if tb >= n:
        tb = n                                       # single full-extent block
    grid = (pl.cdiv(n, tb),)

    # --- Constants, replicated to full tile height (no in-kernel broadcast) --
    eye_flat = jnp.eye(d, dtype=dtype).reshape(1, dd)
    eye_blk = jnp.broadcast_to(eye_flat, (tb, dd))
    eps_blk = eye_blk * jnp.asarray(BETA, dtype)

    cost = pl.CostEstimate(
        flops=5 * n * dd,
        transcendentals=n * dd,
        bytes_accessed=2 * n * dd * itemsize,
    )

    out = pl.pallas_call(
        m_log_kernel,
        out_shape=jax.ShapeDtypeStruct((n, dd), dtype),
        grid_spec=pltpu.PrefetchScalarGridSpec(
            num_scalar_prefetch=0,
            grid=grid,
            in_specs=[
                pl.BlockSpec((tb, dd), lambda i: (i, 0)),
                pl.BlockSpec((tb, dd), lambda i: (0, 0)),  # eps: same block every step
                pl.BlockSpec((tb, dd), lambda i: (0, 0)),  # eye: same block every step
            ],
            out_specs=pl.BlockSpec((tb, dd), lambda i: (i, 0)),
        ),
        compiler_params=pltpu.CompilerParams(
            dimension_semantics=("parallel",)),
        cost_estimate=cost,
    )(xf, eps_blk, eye_blk)
    return out.reshape(n, d, d)


def m_log_ref(x):
    """Pure-JAX reference mirroring the PyTorch forward exactly."""
    n, d, _ = x.shape
    eps = (jnp.eye(d, dtype=x.dtype) * BETA)[None, :, :]
    x2 = jnp.where(x - eps < 0, eps, x)
    one = jnp.ones_like(x2)
    e = jnp.eye(d, dtype=x.dtype)
    return jnp.log(x2 + one - e)


if __name__ == "__main__":
    key = jax.random.PRNGKey(0)

    # Small shape consistent with the module: batch of 2, 16x16 matrices.
    n, d = 2, 16
    x = jax.random.uniform(key, (n, d, d), dtype=jnp.float32,
                           minval=-0.5, maxval=2.0)
    out = jax.block_until_ready(m_log(x))
    ref = m_log_ref(x)
    assert out.shape == (n, d, d)
    assert out.dtype == jnp.float32
    assert jnp.allclose(out, ref, atol=1e-5, rtol=1e-5), \
        "mismatch vs reference (small)"

    # Larger batch to exercise the multi-step, lane-dense tiled grid path
    # (grid has >= 8 steps so both v7x TensorCores get pipelined work).
    n_big = 4096
    x_big = jax.random.uniform(jax.random.PRNGKey(1), (n_big, d, d),
                               dtype=jnp.float32, minval=-0.5, maxval=2.0)
    out_big = jax.block_until_ready(m_log(x_big))
    assert jnp.allclose(out_big, m_log_ref(x_big), atol=1e-5, rtol=1e-5), \
        "mismatch vs reference (large batch)"

    print("KERNEL_OK")
</pallas_src>

<mosaic_0001>
module attributes {stable_mosaic.version = 11 : i64} {
  func.func @m_log_kernel(%arg0: i32, %arg1: memref<2x256xf32, #tpu.memory_space<vmem>>, %arg2: memref<2x256xf32, #tpu.memory_space<vmem>>, %arg3: memref<2x256xf32, #tpu.memory_space<vmem>>, %arg4: memref<2x256xf32, #tpu.memory_space<vmem>>) attributes {dimension_semantics = [#tpu.dimension_semantics<parallel>], iteration_bounds = array<i64: 1>, scalar_prefetch = 0 : i64, scratch_operands = 0 : i64, tpu.core_type = #tpu.core_type<tc>, window_params = [{transform_indices = @transform_0, window_bounds = array<i64: 2, 256>}, {pipeline_mode = #tpu.pipeline_mode<synchronous>, transform_indices = @transform_1, window_bounds = array<i64: 2, 256>}, {pipeline_mode = #tpu.pipeline_mode<synchronous>, transform_indices = @transform_2, window_bounds = array<i64: 2, 256>}, {transform_indices = @transform_3, window_bounds = array<i64: 2, 256>}]} {
    %c0 = arith.constant 0 : index
    %c0_0 = arith.constant 0 : index
    %0 = vector.load %arg1[%c0, %c0_0] : memref<2x256xf32, #tpu.memory_space<vmem>>, vector<2x256xf32>
    %c0_1 = arith.constant 0 : index
    %c0_2 = arith.constant 0 : index
    %1 = vector.load %arg2[%c0_1, %c0_2] : memref<2x256xf32, #tpu.memory_space<vmem>>, vector<2x256xf32>
    %2 = arith.subf %0, %1 : vector<2x256xf32>
    %cst = arith.constant 0.000000e+00 : f32
    %3 = vector.broadcast %cst : f32 to vector<2x256xf32>
    %4 = arith.cmpf olt, %2, %3 : vector<2x256xf32>
    %5 = arith.select %4, %1, %0 : vector<2x256xi1>, vector<2x256xf32>
    %cst_3 = arith.constant 1.000000e+00 : f32
    %6 = vector.broadcast %cst_3 : f32 to vector<2x256xf32>
    %7 = arith.addf %5, %6 : vector<2x256xf32>
    %c0_4 = arith.constant 0 : index
    %c0_5 = arith.constant 0 : index
    %8 = vector.load %arg3[%c0_4, %c0_5] : memref<2x256xf32, #tpu.memory_space<vmem>>, vector<2x256xf32>
    %9 = arith.subf %7, %8 : vector<2x256xf32>
    %10 = math.log %9 : vector<2x256xf32>
    %c0_6 = arith.constant 0 : index
    %c0_7 = arith.constant 0 : index
    %11 = vector.load %arg4[%c0_6, %c0_7] : memref<2x256xf32, #tpu.memory_space<vmem>>, vector<2x256xf32>
    tpu.vector_store %arg4[%c0_6, %c0_7], %10 {strides = array<i32>} : memref<2x256xf32, #tpu.memory_space<vmem>>, vector<2x256xf32>,
    return
  }
  func.func @transform_0(%arg0: i32) -> (i32, i32) {
    %c0_i32 = arith.constant 0 : i32
    %c0_i32_0 = arith.constant 0 : i32
    return %arg0, %c0_i32 : i32, i32
  }
  func.func @transform_1(%arg0: i32) -> (i32, i32) {
    %c0_i32 = arith.constant 0 : i32
    %c0_i32_0 = arith.constant 0 : i32
    %c0_i32_1 = arith.constant 0 : i32
    return %c0_i32, %c0_i32_0 : i32, i32
  }
  func.func @transform_2(%arg0: i32) -> (i32, i32) {
    %c0_i32 = arith.constant 0 : i32
    %c0_i32_0 = arith.constant 0 : i32
    %c0_i32_1 = arith.constant 0 : i32
    return %c0_i32, %c0_i32_0 : i32, i32
  }
  func.func @transform_3(%arg0: i32) -> (i32, i32) {
    %c0_i32 = arith.constant 0 : i32
    %c0_i32_0 = arith.constant 0 : i32
    return %arg0, %c0_i32 : i32, i32
  }
}

</mosaic_0001>

<llo_original>
// kernel: tpu_custom_call.1
$region0: #{tpu_custom_call.1}
  #allocation0 [shape = 'u32[]', space=smem, size = 0x4, offset = 0x4, fixed_abs, tag = 'smem constant byte address 0x4 - core index']
  #allocation1 [shape = 'u32[144,128]{1,0:T(1,128)}', space=vmem, size = 0x12000, scoped, tag = 'internal scratch']
  %s0 = inlined_call_operand.hbm [shape: f32[2,256], index: 0, kind: input, shape index: {}]
  %s1 = inlined_call_operand.hbm [shape: f32[2,256], index: 1, kind: input, shape index: {}]
  %s2 = inlined_call_operand.vmem [shape: f32[2,256], index: 2, kind: input, shape index: {}]
  %s3 = inlined_call_operand.hbm [shape: f32[2,256], index: 3, kind: output, shape index: {}]
  %s4 = sld [smem:[#allocation0]]
  $region30: #{tpu_custom_call.1} parent=0
    _
  %s6 = ssub.s32 1, %s4
  %s7 = scalar_select 0, %s6, %s4
  $region1: #{tpu_custom_call.1} parent=0
    #allocation2 [shape = 'u8[2048]{0}', space=vmem, size = 0x800, scoped, tag = 'input window, operand 0, single buffered']
    #allocation3 [shape = 's32[1]{0}', space=sflag, size = 0x4, scoped, tag = 'scoped memory for tpu_custom_call.1']
    #allocation4 [shape = 's32[1]{0}', space=sflag, size = 0x4, scoped, tag = 'scoped memory for tpu_custom_call.1']
    #allocation5 [shape = 'u8[2048]{0}', space=vmem, size = 0x800, scoped, tag = 'input window, operand 1, single buffered']
    #allocation6 [shape = 's32[1]{0}', space=sflag, size = 0x4, scoped, tag = 'scoped memory for tpu_custom_call.1']
    #allocation7 [shape = 'u8[2048]{0}', space=vmem, size = 0x800, scoped, tag = 'output window, operand 0, single buffered']
    %8 = vsyncpa [#allocation3], 0
    %9 = vsyncpa [#allocation6], 0
    %10 = vsyncpa [#allocation4], 0
    // Predicated region
    $region2: #{tpu_custom_call.1} parent=1 // pred_check
      _
    $region3: #{tpu_custom_call.1} parent=1 // pred_check_branch
      %12 = sbr.rel (0) target = $region5
    $region4: #{tpu_custom_call.1} parent=1 // pred_region
      %s14 = ssub.s32 64, 64
      %15 = vsyncadd [#allocation3], %s14
      %s17 = sshll.u32 [#allocation2], 4
      %s18 = int_to_ptr.vmem [resolvable:$true] %s17
      %20 = dma.hbm_to_vmem [thread:$0]  %s0, 64, %s18, [#allocation3]
    $region5: #{tpu_custom_call.1} parent=1 // pred_fallthru
      _
    // Predicated region
    $region6: #{tpu_custom_call.1} parent=1 // pred_check
      _
    $region7: #{tpu_custom_call.1} parent=1 // pred_check_branch
      %22 = sbr.rel (0) target = $region9
    $region8: #{tpu_custom_call.1} parent=1 // pred_region
      %s24 = ssub.s32 64, 64
      %25 = vsyncadd [#allocation6], %s24
      %s27 = sshll.u32 [#allocation5], 4
      %s28 = int_to_ptr.vmem [resolvable:$true] %s27
      %30 = dma.hbm_to_vmem [thread:$0]  %s1, 64, %s28, [#allocation6]
    $region9: #{tpu_custom_call.1} parent=1 // pred_fallthru
      _
    // Predicated region
    $region10: #{tpu_custom_call.1} parent=1 // pred_check
      _
    $region11: #{tpu_custom_call.1} parent=1 // pred_check_branch
      %32 = sbr.rel (0) target = $region13
    $region12: #{tpu_custom_call.1} parent=1 // pred_region
      _
    $region13: #{tpu_custom_call.1} parent=1 // pred_fallthru
      _
    // Predicated region
    $region14: #{tpu_custom_call.1} parent=1 // pred_check
      _
    $region15: #{tpu_custom_call.1} parent=1 // pred_check_branch
      %34 = sbr.rel (0) target = $region17
    $region16: #{tpu_custom_call.1} parent=1 // pred_region
      %35 = dma.done [#allocation3], 64
    $region17: #{tpu_custom_call.1} parent=1 // pred_fallthru
      _
    // Predicated region
    $region18: #{tpu_custom_call.1} parent=1 // pred_check
      _
    $region19: #{tpu_custom_call.1} parent=1 // pred_check_branch
      %37 = sbr.rel (0) target = $region21
    $region20: #{tpu_custom_call.1} parent=1 // pred_region
      %38 = dma.done [#allocation6], 64
    $region21: #{tpu_custom_call.1} parent=1 // pred_fallthru
      _
    %v39 = vld [vmem:[#allocation2] sm:$0xf]
    %v40 = vld [vmem:[#allocation5] sm:$0xf]
    %v41 = vsub.f32 %v39, %v40
    %vm42 = vcmp.lt.f32.partialorder %v41, 0.0
    %v43 = vsel %vm42, %v40, %v39
    %v44 = vadd.f32 %v43, 1.0
    %v45 = vld [vmem:[%s2] sm:$0xf]
    %v46 = vsub.f32 %v44, %v45
    %v47 = vlog2.pop %v46
    %v48 = vmul.f32 %v47, 0.6931472
    %49 = vst [vmem:[#allocation7] sm:$0xf] %v48
    // Predicated region
    $region22: #{tpu_custom_call.1} parent=1 // pred_check
      _
    $region23: #{tpu_custom_call.1} parent=1 // pred_check_branch
      %51 = sbr.rel (0) target = $region25
    $region24: #{tpu_custom_call.1} parent=1 // pred_region
      %s53 = ssub.s32 64, 64
      %54 = vsyncadd [#allocation4], %s53
      %s56 = sshll.u32 [#allocation7], 4
      %s57 = int_to_ptr.vmem [resolvable:$true] %s56
      %59 = dma.vmem_to_hbm [thread:$0]  %s57, 64, %s3, [#allocation4]
    $region25: #{tpu_custom_call.1} parent=1 // pred_fallthru
      _
    // Predicated region
    $region26: #{tpu_custom_call.1} parent=1 // pred_check
      _
    $region27: #{tpu_custom_call.1} parent=1 // pred_check_branch
      %61 = sbr.rel (0) target = $region29
    $region28: #{tpu_custom_call.1} parent=1 // pred_region
      %62 = dma.done [#allocation4], 64
    $region29: #{tpu_custom_call.1} parent=1 // pred_fallthru
      _
    %63 = vsyncpa [#allocation3], 1
    %64 = vsyncpa [#allocation6], 1
    %65 = vsyncpa [#allocation4], 1

</llo_original>
